<compile_context>
chip_gen: v7x
topology: tpu7x:2x2x1
jax: 0.10.0
libtpu: 0.0.40
codegen_flags: <defaults>
</compile_context>

<pallas_src>
import jax
import jax.numpy as jnp
from jax import lax
from jax.experimental import pallas as pl
from jax.experimental.pallas import tpu as pltpu

# ----------------------------- sizes (small, synthetic) ----------------------
B = 2              # batch
C = 4              # image channels
H = W = 16         # image spatial
S = 8              # text sequence length
VOCAB = 64         # stand-in vocab size
IMG_FEAT = 256     # stands in for resnet.fc.in_features (2048)
TXT_FEAT = 128     # stands in for BERT hidden_size (768)
HIDDEN = 128       # hidden_dim (module default 256; kept small per instructions)
LN_EPS = 1e-5      # nn.LayerNorm default eps

# ----------------------------- TPU-friendly padded sizes ---------------------
B_PAD = 8          # pad batch to a full sublane group
C_PAD = 128        # pad tiny pooled-channel K dim to a full lane tile
PARAM_ROWS = 8     # bias/gamma/beta packed rows, padded to 8 sublanes


# ----------------------------- Pallas kernel ---------------------------------
def joint_embed_kernel(pooled_ref, backbone_ref, tok_ref, mask_ref,
                       wv_ref, wt_ref, pv_ref, pt_ref,
                       img_ref, txt_ref):
    """Both modalities, one straight-line invocation (no grid).

    Inputs (whole arrays resident in VMEM):
      pooled_ref:   (B_PAD, C_PAD)        f32  zero-padded pooled image
      backbone_ref: (C_PAD, IMG_FEAT)     f32  stand-in vision backbone weight
      tok_ref:      (B_PAD, S, TXT_FEAT)  f32  token embeddings
      mask_ref:     (B_PAD, S)            f32  attention mask
      wv_ref:       (IMG_FEAT, HIDDEN)    bf16 vision projection weight
      wt_ref:       (TXT_FEAT, HIDDEN)    bf16 text projection weight
      pv_ref/pt_ref:(PARAM_ROWS, HIDDEN)  f32  rows: [bias, gamma, beta, 0...]
    Outputs:
      img_ref/txt_ref: (B_PAD, HIDDEN)    f32
    """

    def proj_layernorm(feat, w_ref, p_ref, out_ref):
        # bf16 MXU matmul, f32 accumulate; LayerNorm elementwise math in f32.
        p = p_ref[...]
        bias, gamma, beta = p[0:1, :], p[1:2, :], p[2:3, :]
        y = jnp.dot(feat.astype(jnp.bfloat16), w_ref[...],
                    preferred_element_type=jnp.float32) + bias
        mean = jnp.mean(y, axis=-1, keepdims=True)
        centered = y - mean
        var = jnp.mean(centered * centered, axis=-1, keepdims=True)
        out_ref[...] = (centered * lax.rsqrt(var + LN_EPS) * gamma + beta
                        ).astype(out_ref.dtype)

    # ---- stand-in vision "encoder": pooled image -> backbone feature --------
    # K zero-padded from C=4 to 128 lanes; padded backbone rows are zero -> exact.
    vis_feat = jnp.dot(pooled_ref[...], backbone_ref[...],
                       preferred_element_type=jnp.float32)       # (B_PAD, IMG_FEAT)

    # ---- stand-in text "encoder": mask-weighted mean pooling + tanh ---------
    tok = tok_ref[...]                                           # (B_PAD, S, TXT_FEAT)
    mask = mask_ref[...]                                         # (B_PAD, S)
    acc = jnp.zeros((B_PAD, TXT_FEAT), jnp.float32)
    for s in range(S):                                           # S=8, fully unrolled
        acc = acc + tok[:, s, :] * mask[:, s:s + 1]
    denom = jnp.maximum(jnp.sum(mask, axis=-1, keepdims=True), 1.0)
    txt_feat = jnp.tanh(acc / denom)                             # (B_PAD, TXT_FEAT)

    # ---- per-modality projection + LayerNorm ---------------------------------
    proj_layernorm(vis_feat, wv_ref, pv_ref, img_ref)
    proj_layernorm(txt_feat, wt_ref, pt_ref, txt_ref)


# ----------------------------- parameter init --------------------------------
def init_params(key):
    ks = jax.random.split(key, 8)
    scale_v = 1.0 / jnp.sqrt(IMG_FEAT)
    scale_t = 1.0 / jnp.sqrt(TXT_FEAT)
    return {
        # vision_proj: nn.Linear(in_features -> hidden); stored as (in, out)
        "vision_proj_w": jax.random.uniform(ks[0], (IMG_FEAT, HIDDEN),
                                            jnp.float32, -scale_v, scale_v),
        "vision_proj_b": jax.random.uniform(ks[1], (HIDDEN,),
                                            jnp.float32, -scale_v, scale_v),
        # text_proj: nn.Linear(hidden_size -> hidden); stored as (in, out)
        "text_proj_w": jax.random.uniform(ks[2], (TXT_FEAT, HIDDEN),
                                          jnp.float32, -scale_t, scale_t),
        "text_proj_b": jax.random.uniform(ks[3], (HIDDEN,),
                                          jnp.float32, -scale_t, scale_t),
        # LayerNorms: default init gamma=1, beta=0
        "image_norm_g": jnp.ones((HIDDEN,), jnp.float32),
        "image_norm_b": jnp.zeros((HIDDEN,), jnp.float32),
        "text_norm_g": jnp.ones((HIDDEN,), jnp.float32),
        "text_norm_b": jnp.zeros((HIDDEN,), jnp.float32),
        # stand-in "encoder" params (deterministic, synthetic)
        "vision_backbone_w": jax.random.normal(ks[4], (C, IMG_FEAT),
                                               jnp.float32) * 0.05,
        "text_embed_table": jax.random.normal(ks[5], (VOCAB, TXT_FEAT),
                                              jnp.float32) * 0.05,
    }


# ----------------------------- forward ----------------------------------------
@jax.jit
def joint_embedding_forward(params, images, input_ids, attention_mask):
    # TODO(synk): pretrained ResNet50 backbone has no in-script Pallas
    # equivalent; stand-in = global average pool + fixed projection (the matmul
    # runs inside the kernel).
    pooled = jnp.mean(images, axis=(2, 3))                          # [B, C]
    # TODO(synk): pretrained BERT encoder/pooler + tokenizer have no in-script
    # Pallas equivalent; stand-in "pooler_output" = mask-weighted mean of a
    # token embedding lookup + tanh (the mean/tanh run inside the kernel).
    tok_emb = jnp.take(params["text_embed_table"], input_ids, axis=0)  # [B,S,TXT_FEAT]
    mask_f = attention_mask.astype(jnp.float32)                     # [B, S]

    # ---- pad to TPU-friendly tiles (batch -> 8 sublanes, K -> lane-aligned) --
    pooled_p = jnp.pad(pooled, ((0, B_PAD - B), (0, C_PAD - C)))
    backbone_p = jnp.pad(params["vision_backbone_w"], ((0, C_PAD - C), (0, 0)))
    tok_p = jnp.pad(tok_emb, ((0, B_PAD - B), (0, 0), (0, 0)))
    mask_p = jnp.pad(mask_f, ((0, B_PAD - B), (0, 0)))

    # ---- per-modality projection weights (bf16) + packed bias/gamma/beta slab -
    w_v = params["vision_proj_w"].astype(jnp.bfloat16)              # (IMG_FEAT, HIDDEN)
    w_t = params["text_proj_w"].astype(jnp.bfloat16)                # (TXT_FEAT, HIDDEN)

    def pack3(b, g, be):
        p = jnp.stack([b, g, be], axis=0)                           # (3, HIDDEN)
        return jnp.pad(p, ((0, PARAM_ROWS - 3), (0, 0)))            # (8, HIDDEN)

    p_v = pack3(params["vision_proj_b"], params["image_norm_g"],
                params["image_norm_b"])
    p_t = pack3(params["text_proj_b"], params["text_norm_g"],
                params["text_norm_b"])

    vmem_spec = pl.BlockSpec(memory_space=pltpu.MemorySpace.VMEM)
    img_p, txt_p = pl.pallas_call(
        joint_embed_kernel,
        out_shape=(jax.ShapeDtypeStruct((B_PAD, HIDDEN), jnp.float32),
                   jax.ShapeDtypeStruct((B_PAD, HIDDEN), jnp.float32)),
        in_specs=[vmem_spec] * 8,
        out_specs=(vmem_spec, vmem_spec),
    )(pooled_p, backbone_p, tok_p, mask_p, w_v, w_t, p_v, p_t)

    return img_p[:B], txt_p[:B]


# ----------------------------- reference check --------------------------------
def reference_forward(params, images, input_ids, attention_mask):
    """Pure-JAX reference with matching numerics (bf16 matmul, f32 LN)."""
    pooled = jnp.mean(images, axis=(2, 3))
    img_feat = pooled @ params["vision_backbone_w"]

    def proj_ln(x, w, b, g, be):
        y = jnp.dot(x.astype(jnp.bfloat16), w.astype(jnp.bfloat16),
                    preferred_element_type=jnp.float32) + b
        m = jnp.mean(y, axis=-1, keepdims=True)
        c = y - m
        v = jnp.mean(c * c, axis=-1, keepdims=True)
        return c * lax.rsqrt(v + LN_EPS) * g + be

    img_emb = proj_ln(img_feat, params["vision_proj_w"], params["vision_proj_b"],
                      params["image_norm_g"], params["image_norm_b"])

    tok_emb = jnp.take(params["text_embed_table"], input_ids, axis=0)
    mask = attention_mask.astype(jnp.float32)[:, :, None]
    denom = jnp.maximum(jnp.sum(mask, axis=1), 1.0)
    text_feat = jnp.tanh(jnp.sum(tok_emb * mask, axis=1) / denom)
    text_emb = proj_ln(text_feat, params["text_proj_w"], params["text_proj_b"],
                       params["text_norm_g"], params["text_norm_b"])
    return img_emb, text_emb


if __name__ == "__main__":
    key = jax.random.PRNGKey(0)
    k_params, k_img, k_ids = jax.random.split(key, 3)

    params = init_params(k_params)

    images = jax.random.normal(k_img, (B, C, H, W), jnp.float32)       # NCHW
    input_ids = jax.random.randint(k_ids, (B, S), 0, VOCAB, jnp.int32)
    attention_mask = jnp.ones((B, S), jnp.int32).at[1, S - 3:].set(0)  # ragged mask

    img_emb, text_emb = joint_embedding_forward(params, images, input_ids,
                                                attention_mask)
    jax.block_until_ready((img_emb, text_emb))

    ref_img, ref_txt = reference_forward(params, images, input_ids,
                                         attention_mask)
    assert img_emb.shape == (B, HIDDEN) and text_emb.shape == (B, HIDDEN)
    assert jnp.allclose(img_emb, ref_img, atol=2e-2, rtol=2e-2)
    assert jnp.allclose(text_emb, ref_txt, atol=2e-2, rtol=2e-2)

    print("KERNEL_OK")
</pallas_src>

<mosaic_0001>
module attributes {stable_mosaic.version = 11 : i64} {
  func.func @joint_embed_kernel(%arg0: memref<8x128xf32, #tpu.memory_space<vmem>>, %arg1: memref<128x256xf32, #tpu.memory_space<vmem>>, %arg2: memref<8x8x128xf32, #tpu.memory_space<vmem>>, %arg3: memref<8x8xf32, #tpu.memory_space<vmem>>, %arg4: memref<256x128xbf16, #tpu.memory_space<vmem>>, %arg5: memref<128x128xbf16, #tpu.memory_space<vmem>>, %arg6: memref<8x128xf32, #tpu.memory_space<vmem>>, %arg7: memref<8x128xf32, #tpu.memory_space<vmem>>, %arg8: memref<8x128xf32, #tpu.memory_space<vmem>>, %arg9: memref<8x128xf32, #tpu.memory_space<vmem>>) attributes {dimension_semantics = [], scalar_prefetch = 0 : i64, scratch_operands = 0 : i64, tpu.core_type = #tpu.core_type<tc>} {
    %c0 = arith.constant 0 : index
    %c0_0 = arith.constant 0 : index
    %0 = vector.load %arg0[%c0, %c0_0] : memref<8x128xf32, #tpu.memory_space<vmem>>, vector<8x128xf32>
    %c0_1 = arith.constant 0 : index
    %c0_2 = arith.constant 0 : index
    %1 = vector.load %arg1[%c0_1, %c0_2] : memref<128x256xf32, #tpu.memory_space<vmem>>, vector<128x256xf32>
    %cst = arith.constant dense<0.000000e+00> : vector<8x256xf32>
    %2 = tpu.matmul %0, %1, %cst {dimension_numbers = #tpu.dot_dimension_numbers<[1], [0], [0], [1], [0, 0, 1, 1], [], []>} : vector<8x128xf32>, vector<128x256xf32>, vector<8x256xf32> -> vector<8x256xf32>
    %c0_3 = arith.constant 0 : index
    %c0_4 = arith.constant 0 : index
    %c0_5 = arith.constant 0 : index
    %3 = vector.load %arg2[%c0_3, %c0_4, %c0_5] : memref<8x8x128xf32, #tpu.memory_space<vmem>>, vector<8x8x128xf32>
    %c0_6 = arith.constant 0 : index
    %c0_7 = arith.constant 0 : index
    %4 = vector.load %arg3[%c0_6, %c0_7] : memref<8x8xf32, #tpu.memory_space<vmem>>, vector<8x8xf32>
    %cst_8 = arith.constant 0.000000e+00 : f32
    %5 = vector.broadcast %cst_8 : f32 to vector<8x128xf32>
    %6 = vector.extract_strided_slice %3 {offsets = [0, 0, 0], sizes = [8, 1, 128], strides = [1, 1, 1]} : vector<8x8x128xf32> to vector<8x1x128xf32>
    %7 = vector.shape_cast %6 : vector<8x1x128xf32> to vector<8x128xf32>
    %8 = vector.extract_strided_slice %4 {offsets = [0, 0], sizes = [8, 1], strides = [1, 1]} : vector<8x8xf32> to vector<8x1xf32>
    %9 = vector.broadcast %8 : vector<8x1xf32> to vector<8x128xf32>
    %10 = arith.mulf %7, %9 : vector<8x128xf32>
    %11 = arith.addf %5, %10 : vector<8x128xf32>
    %12 = vector.extract_strided_slice %3 {offsets = [0, 1, 0], sizes = [8, 1, 128], strides = [1, 1, 1]} : vector<8x8x128xf32> to vector<8x1x128xf32>
    %13 = vector.shape_cast %12 : vector<8x1x128xf32> to vector<8x128xf32>
    %14 = vector.extract_strided_slice %4 {offsets = [0, 1], sizes = [8, 1], strides = [1, 1]} : vector<8x8xf32> to vector<8x1xf32>
    %15 = vector.broadcast %14 : vector<8x1xf32> to vector<8x128xf32>
    %16 = arith.mulf %13, %15 : vector<8x128xf32>
    %17 = arith.addf %11, %16 : vector<8x128xf32>
    %18 = vector.extract_strided_slice %3 {offsets = [0, 2, 0], sizes = [8, 1, 128], strides = [1, 1, 1]} : vector<8x8x128xf32> to vector<8x1x128xf32>
    %19 = vector.shape_cast %18 : vector<8x1x128xf32> to vector<8x128xf32>
    %20 = vector.extract_strided_slice %4 {offsets = [0, 2], sizes = [8, 1], strides = [1, 1]} : vector<8x8xf32> to vector<8x1xf32>
    %21 = vector.broadcast %20 : vector<8x1xf32> to vector<8x128xf32>
    %22 = arith.mulf %19, %21 : vector<8x128xf32>
    %23 = arith.addf %17, %22 : vector<8x128xf32>
    %24 = vector.extract_strided_slice %3 {offsets = [0, 3, 0], sizes = [8, 1, 128], strides = [1, 1, 1]} : vector<8x8x128xf32> to vector<8x1x128xf32>
    %25 = vector.shape_cast %24 : vector<8x1x128xf32> to vector<8x128xf32>
    %26 = vector.extract_strided_slice %4 {offsets = [0, 3], sizes = [8, 1], strides = [1, 1]} : vector<8x8xf32> to vector<8x1xf32>
    %27 = vector.broadcast %26 : vector<8x1xf32> to vector<8x128xf32>
    %28 = arith.mulf %25, %27 : vector<8x128xf32>
    %29 = arith.addf %23, %28 : vector<8x128xf32>
    %30 = vector.extract_strided_slice %3 {offsets = [0, 4, 0], sizes = [8, 1, 128], strides = [1, 1, 1]} : vector<8x8x128xf32> to vector<8x1x128xf32>
    %31 = vector.shape_cast %30 : vector<8x1x128xf32> to vector<8x128xf32>
    %32 = vector.extract_strided_slice %4 {offsets = [0, 4], sizes = [8, 1], strides = [1, 1]} : vector<8x8xf32> to vector<8x1xf32>
    %33 = vector.broadcast %32 : vector<8x1xf32> to vector<8x128xf32>
    %34 = arith.mulf %31, %33 : vector<8x128xf32>
    %35 = arith.addf %29, %34 : vector<8x128xf32>
    %36 = vector.extract_strided_slice %3 {offsets = [0, 5, 0], sizes = [8, 1, 128], strides = [1, 1, 1]} : vector<8x8x128xf32> to vector<8x1x128xf32>
    %37 = vector.shape_cast %36 : vector<8x1x128xf32> to vector<8x128xf32>
    %38 = vector.extract_strided_slice %4 {offsets = [0, 5], sizes = [8, 1], strides = [1, 1]} : vector<8x8xf32> to vector<8x1xf32>
    %39 = vector.broadcast %38 : vector<8x1xf32> to vector<8x128xf32>
    %40 = arith.mulf %37, %39 : vector<8x128xf32>
    %41 = arith.addf %35, %40 : vector<8x128xf32>
    %42 = vector.extract_strided_slice %3 {offsets = [0, 6, 0], sizes = [8, 1, 128], strides = [1, 1, 1]} : vector<8x8x128xf32> to vector<8x1x128xf32>
    %43 = vector.shape_cast %42 : vector<8x1x128xf32> to vector<8x128xf32>
    %44 = vector.extract_strided_slice %4 {offsets = [0, 6], sizes = [8, 1], strides = [1, 1]} : vector<8x8xf32> to vector<8x1xf32>
    %45 = vector.broadcast %44 : vector<8x1xf32> to vector<8x128xf32>
    %46 = arith.mulf %43, %45 : vector<8x128xf32>
    %47 = arith.addf %41, %46 : vector<8x128xf32>
    %48 = vector.extract_strided_slice %3 {offsets = [0, 7, 0], sizes = [8, 1, 128], strides = [1, 1, 1]} : vector<8x8x128xf32> to vector<8x1x128xf32>
    %49 = vector.shape_cast %48 : vector<8x1x128xf32> to vector<8x128xf32>
    %50 = vector.extract_strided_slice %4 {offsets = [0, 7], sizes = [8, 1], strides = [1, 1]} : vector<8x8xf32> to vector<8x1xf32>
    %51 = vector.broadcast %50 : vector<8x1xf32> to vector<8x128xf32>
    %52 = arith.mulf %49, %51 : vector<8x128xf32>
    %53 = arith.addf %47, %52 : vector<8x128xf32>
    %cst_9 = arith.constant dense<0.000000e+00> : vector<8xf32>
    %54 = vector.multi_reduction <add>, %4, %cst_9 [1] : vector<8x8xf32> to vector<8xf32>
    %55 = vector.shape_cast %54 : vector<8xf32> to vector<8x1xf32>
    %cst_10 = arith.constant 1.000000e+00 : f32
    %56 = vector.broadcast %cst_10 : f32 to vector<8x1xf32>
    %57 = arith.maximumf %55, %56 : vector<8x1xf32>
    %58 = vector.broadcast %57 : vector<8x1xf32> to vector<8x128xf32>
    %59 = arith.divf %53, %58 : vector<8x128xf32>
    %60 = math.tanh %59 : vector<8x128xf32>
    %c0_11 = arith.constant 0 : index
    %c0_12 = arith.constant 0 : index
    %61 = vector.load %arg6[%c0_11, %c0_12] : memref<8x128xf32, #tpu.memory_space<vmem>>, vector<8x128xf32>
    %62 = vector.extract_strided_slice %61 {offsets = [0, 0], sizes = [1, 128], strides = [1, 1]} : vector<8x128xf32> to vector<1x128xf32>
    %63 = vector.extract_strided_slice %61 {offsets = [1, 0], sizes = [1, 128], strides = [1, 1]} : vector<8x128xf32> to vector<1x128xf32>
    %64 = vector.extract_strided_slice %61 {offsets = [2, 0], sizes = [1, 128], strides = [1, 1]} : vector<8x128xf32> to vector<1x128xf32>
    %65 = arith.truncf %2 : vector<8x256xf32> to vector<8x256xbf16>
    %c0_13 = arith.constant 0 : index
    %c0_14 = arith.constant 0 : index
    %66 = vector.load %arg4[%c0_13, %c0_14] : memref<256x128xbf16, #tpu.memory_space<vmem>>, vector<256x128xbf16>
    %cst_15 = arith.constant dense<0.000000e+00> : vector<8x128xf32>
    %67 = tpu.matmul %65, %66, %cst_15 {dimension_numbers = #tpu.dot_dimension_numbers<[1], [0], [0], [1], [0, 0, 1, 1], [], []>} : vector<8x256xbf16>, vector<256x128xbf16>, vector<8x128xf32> -> vector<8x128xf32>
    %68 = vector.broadcast %62 : vector<1x128xf32> to vector<8x128xf32>
    %69 = arith.addf %67, %68 : vector<8x128xf32>
    %cst_16 = arith.constant dense<0.000000e+00> : vector<8xf32>
    %70 = vector.multi_reduction <add>, %69, %cst_16 [1] : vector<8x128xf32> to vector<8xf32>
    %71 = vector.shape_cast %70 : vector<8xf32> to vector<8x1xf32>
    %cst_17 = arith.constant 1.280000e+02 : f32
    %72 = vector.broadcast %cst_17 : f32 to vector<8x1xf32>
    %73 = arith.divf %71, %72 : vector<8x1xf32>
    %74 = vector.broadcast %73 : vector<8x1xf32> to vector<8x128xf32>
    %75 = arith.subf %69, %74 : vector<8x128xf32>
    %76 = arith.mulf %75, %75 : vector<8x128xf32>
    %cst_18 = arith.constant dense<0.000000e+00> : vector<8xf32>
    %77 = vector.multi_reduction <add>, %76, %cst_18 [1] : vector<8x128xf32> to vector<8xf32>
    %78 = vector.shape_cast %77 : vector<8xf32> to vector<8x1xf32>
    %cst_19 = arith.constant 1.280000e+02 : f32
    %79 = vector.broadcast %cst_19 : f32 to vector<8x1xf32>
    %80 = arith.divf %78, %79 : vector<8x1xf32>
    %cst_20 = arith.constant 9.99999974E-6 : f32
    %81 = vector.broadcast %cst_20 : f32 to vector<8x1xf32>
    %82 = arith.addf %80, %81 : vector<8x1xf32>
    %83 = math.rsqrt %82 : vector<8x1xf32>
    %84 = vector.broadcast %83 : vector<8x1xf32> to vector<8x128xf32>
    %85 = arith.mulf %75, %84 : vector<8x128xf32>
    %86 = vector.broadcast %63 : vector<1x128xf32> to vector<8x128xf32>
    %87 = arith.mulf %85, %86 : vector<8x128xf32>
    %88 = vector.broadcast %64 : vector<1x128xf32> to vector<8x128xf32>
    %89 = arith.addf %87, %88 : vector<8x128xf32>
    %c0_21 = arith.constant 0 : index
    %c0_22 = arith.constant 0 : index
    %90 = vector.load %arg8[%c0_21, %c0_22] : memref<8x128xf32, #tpu.memory_space<vmem>>, vector<8x128xf32>
    tpu.vector_store %arg8[%c0_21, %c0_22], %89 {strides = array<i32>} : memref<8x128xf32, #tpu.memory_space<vmem>>, vector<8x128xf32>,
    %c0_23 = arith.constant 0 : index
    %c0_24 = arith.constant 0 : index
    %91 = vector.load %arg7[%c0_23, %c0_24] : memref<8x128xf32, #tpu.memory_space<vmem>>, vector<8x128xf32>
    %92 = vector.extract_strided_slice %91 {offsets = [0, 0], sizes = [1, 128], strides = [1, 1]} : vector<8x128xf32> to vector<1x128xf32>
    %93 = vector.extract_strided_slice %91 {offsets = [1, 0], sizes = [1, 128], strides = [1, 1]} : vector<8x128xf32> to vector<1x128xf32>
    %94 = vector.extract_strided_slice %91 {offsets = [2, 0], sizes = [1, 128], strides = [1, 1]} : vector<8x128xf32> to vector<1x128xf32>
    %95 = arith.truncf %60 : vector<8x128xf32> to vector<8x128xbf16>
    %c0_25 = arith.constant 0 : index
    %c0_26 = arith.constant 0 : index
    %96 = vector.load %arg5[%c0_25, %c0_26] : memref<128x128xbf16, #tpu.memory_space<vmem>>, vector<128x128xbf16>
    %cst_27 = arith.constant dense<0.000000e+00> : vector<8x128xf32>
    %97 = tpu.matmul %95, %96, %cst_27 {dimension_numbers = #tpu.dot_dimension_numbers<[1], [0], [0], [1], [0, 0, 1, 1], [], []>} : vector<8x128xbf16>, vector<128x128xbf16>, vector<8x128xf32> -> vector<8x128xf32>
    %98 = vector.broadcast %92 : vector<1x128xf32> to vector<8x128xf32>
    %99 = arith.addf %97, %98 : vector<8x128xf32>
    %cst_28 = arith.constant dense<0.000000e+00> : vector<8xf32>
    %100 = vector.multi_reduction <add>, %99, %cst_28 [1] : vector<8x128xf32> to vector<8xf32>
    %101 = vector.shape_cast %100 : vector<8xf32> to vector<8x1xf32>
    %cst_29 = arith.constant 1.280000e+02 : f32
    %102 = vector.broadcast %cst_29 : f32 to vector<8x1xf32>
    %103 = arith.divf %101, %102 : vector<8x1xf32>
    %104 = vector.broadcast %103 : vector<8x1xf32> to vector<8x128xf32>
    %105 = arith.subf %99, %104 : vector<8x128xf32>
    %106 = arith.mulf %105, %105 : vector<8x128xf32>
    %cst_30 = arith.constant dense<0.000000e+00> : vector<8xf32>
    %107 = vector.multi_reduction <add>, %106, %cst_30 [1] : vector<8x128xf32> to vector<8xf32>
    %108 = vector.shape_cast %107 : vector<8xf32> to vector<8x1xf32>
    %cst_31 = arith.constant 1.280000e+02 : f32
    %109 = vector.broadcast %cst_31 : f32 to vector<8x1xf32>
    %110 = arith.divf %108, %109 : vector<8x1xf32>
    %cst_32 = arith.constant 9.99999974E-6 : f32
    %111 = vector.broadcast %cst_32 : f32 to vector<8x1xf32>
    %112 = arith.addf %110, %111 : vector<8x1xf32>
    %113 = math.rsqrt %112 : vector<8x1xf32>
    %114 = vector.broadcast %113 : vector<8x1xf32> to vector<8x128xf32>
    %115 = arith.mulf %105, %114 : vector<8x128xf32>
    %116 = vector.broadcast %93 : vector<1x128xf32> to vector<8x128xf32>
    %117 = arith.mulf %115, %116 : vector<8x128xf32>
    %118 = vector.broadcast %94 : vector<1x128xf32> to vector<8x128xf32>
    %119 = arith.addf %117, %118 : vector<8x128xf32>
    %c0_33 = arith.constant 0 : index
    %c0_34 = arith.constant 0 : index
    %120 = vector.load %arg9[%c0_33, %c0_34] : memref<8x128xf32, #tpu.memory_space<vmem>>, vector<8x128xf32>
    tpu.vector_store %arg9[%c0_33, %c0_34], %119 {strides = array<i32>} : memref<8x128xf32, #tpu.memory_space<vmem>>, vector<8x128xf32>,
    return
  }
}

</mosaic_0001>

<llo_original>
// kernel: joint_embedding_forward.1
$region0: #{joint_embedding_forward.1}
  #allocation0 [shape = 'u32[]', space=smem, size = 0x4, offset = 0x4, fixed_abs, tag = 'smem constant byte address 0x4 - core index']
  #allocation1 [shape = 'u32[144,128]{1,0:T(1,128)}', space=vmem, size = 0x12000, scoped, tag = 'internal scratch']
  %s0 = inlined_call_operand.vmem [shape: f32[8,128], index: 0, kind: input, shape index: {}]
  %s1 = inlined_call_operand.vmem [shape: f32[128,256], index: 1, kind: input, shape index: {}]
  %s2 = inlined_call_operand.vmem [shape: f32[8,8,128], index: 2, kind: input, shape index: {}]
  %s3 = inlined_call_operand.vmem [shape: f32[8,8], index: 3, kind: input, shape index: {}]
  %s4 = inlined_call_operand.vmem [shape: bf16[256,128], index: 4, kind: input, shape index: {}]
  %s5 = inlined_call_operand.vmem [shape: bf16[128,128], index: 5, kind: input, shape index: {}]
  %s6 = inlined_call_operand.vmem [shape: f32[8,128], index: 6, kind: input, shape index: {}]
  %s7 = inlined_call_operand.vmem [shape: f32[8,128], index: 7, kind: input, shape index: {}]
  %s8 = inlined_call_operand.vmem [shape: f32[8,128], index: 8, kind: output, shape index: {0}]
  %s9 = inlined_call_operand.vmem [shape: f32[8,128], index: 9, kind: output, shape index: {1}]
  %10 = xla_tuple %s8, %s9
  %s11 = sld [smem:[#allocation0]]
  $region50: #{joint_embedding_forward.1} parent=0
    _
  %s13 = ssub.s32 1, %s11
  %s14 = scalar_select 0, %s13, %s11
  // Predicated region
  $region2: #{joint_embedding_forward.1} parent=0 // pred_check
    _
  $region3: #{joint_embedding_forward.1} parent=0 // pred_check_branch
    %16 = sbr.rel (0) target = $region5
  $region4: #{joint_embedding_forward.1} parent=0 // pred_region
    _
  $region5: #{joint_embedding_forward.1} parent=0 // pred_fallthru
    _
  // Predicated region
  $region6: #{joint_embedding_forward.1} parent=0 // pred_check
    _
  $region7: #{joint_embedding_forward.1} parent=0 // pred_check_branch
    %18 = sbr.rel (0) target = $region9
  $region8: #{joint_embedding_forward.1} parent=0 // pred_region
    _
  $region9: #{joint_embedding_forward.1} parent=0 // pred_fallthru
    _
  // Predicated region
  $region10: #{joint_embedding_forward.1} parent=0 // pred_check
    _
  $region11: #{joint_embedding_forward.1} parent=0 // pred_check_branch
    %20 = sbr.rel (0) target = $region13
  $region12: #{joint_embedding_forward.1} parent=0 // pred_region
    _
  $region13: #{joint_embedding_forward.1} parent=0 // pred_fallthru
    _
  // Predicated region
  $region14: #{joint_embedding_forward.1} parent=0 // pred_check
    _
  $region15: #{joint_embedding_forward.1} parent=0 // pred_check_branch
    %22 = sbr.rel (0) target = $region17
  $region16: #{joint_embedding_forward.1} parent=0 // pred_region
    _
  $region17: #{joint_embedding_forward.1} parent=0 // pred_fallthru
    _
  // Predicated region
  $region18: #{joint_embedding_forward.1} parent=0 // pred_check
    _
  $region19: #{joint_embedding_forward.1} parent=0 // pred_check_branch
    %24 = sbr.rel (0) target = $region21
  $region20: #{joint_embedding_forward.1} parent=0 // pred_region
    _
  $region21: #{joint_embedding_forward.1} parent=0 // pred_fallthru
    _
  // Predicated region
  $region22: #{joint_embedding_forward.1} parent=0 // pred_check
    _
  $region23: #{joint_embedding_forward.1} parent=0 // pred_check_branch
    %26 = sbr.rel (0) target = $region25
  $region24: #{joint_embedding_forward.1} parent=0 // pred_region
    _
  $region25: #{joint_embedding_forward.1} parent=0 // pred_fallthru
    _
  // Predicated region
  $region26: #{joint_embedding_forward.1} parent=0 // pred_check
    _
  $region27: #{joint_embedding_forward.1} parent=0 // pred_check_branch
    %28 = sbr.rel (0) target = $region29
  $region28: #{joint_embedding_forward.1} parent=0 // pred_region
    _
  $region29: #{joint_embedding_forward.1} parent=0 // pred_fallthru
    _
  // Predicated region
  $region30: #{joint_embedding_forward.1} parent=0 // pred_check
    _
  $region31: #{joint_embedding_forward.1} parent=0 // pred_check_branch
    %30 = sbr.rel (0) target = $region33
  $region32: #{joint_embedding_forward.1} parent=0 // pred_region
    _
  $region33: #{joint_embedding_forward.1} parent=0 // pred_fallthru
    _
  %v32 = vld [vmem:[%s0] sm:$0xff]
  %v33 = vld [vmem:[%s1] sm:$0xff]
  %v34 = vld [vmem:[%s1 + $0x8] sm:$0xff]
  %v35 = vld [vmem:[%s1 + $0x10] sm:$0xff]
  %v36 = vld [vmem:[%s1 + $0x18] sm:$0xff]
  %v37 = vld [vmem:[%s1 + $0x20] sm:$0xff]
  %v38 = vld [vmem:[%s1 + $0x28] sm:$0xff]
  %v39 = vld [vmem:[%s1 + $0x30] sm:$0xff]
  %v40 = vld [vmem:[%s1 + $0x38] sm:$0xff]
  %v41 = vld [vmem:[%s1 + $0x40] sm:$0xff]
  %v42 = vld [vmem:[%s1 + $0x48] sm:$0xff]
  %v43 = vld [vmem:[%s1 + $0x50] sm:$0xff]
  %v44 = vld [vmem:[%s1 + $0x58] sm:$0xff]
  %v45 = vld [vmem:[%s1 + $0x60] sm:$0xff]
  %v46 = vld [vmem:[%s1 + $0x68] sm:$0xff]
  %v47 = vld [vmem:[%s1 + $0x70] sm:$0xff]
  %v48 = vld [vmem:[%s1 + $0x78] sm:$0xff]
  %v49 = vld [vmem:[%s1 + $0x80] sm:$0xff]
  %v50 = vld [vmem:[%s1 + $0x88] sm:$0xff]
  %v51 = vld [vmem:[%s1 + $0x90] sm:$0xff]
  %v52 = vld [vmem:[%s1 + $0x98] sm:$0xff]
  %v53 = vld [vmem:[%s1 + $0xa0] sm:$0xff]
  %v54 = vld [vmem:[%s1 + $0xa8] sm:$0xff]
  %v55 = vld [vmem:[%s1 + $0xb0] sm:$0xff]
  %v56 = vld [vmem:[%s1 + $0xb8] sm:$0xff]
  %v57 = vld [vmem:[%s1 + $0xc0] sm:$0xff]
  %v58 = vld [vmem:[%s1 + $0xc8] sm:$0xff]
  %v59 = vld [vmem:[%s1 + $0xd0] sm:$0xff]
  %v60 = vld [vmem:[%s1 + $0xd8] sm:$0xff]
  %v61 = vld [vmem:[%s1 + $0xe0] sm:$0xff]
  %v62 = vld [vmem:[%s1 + $0xe8] sm:$0xff]
  %v63 = vld [vmem:[%s1 + $0xf0] sm:$0xff]
  %v64 = vld [vmem:[%s1 + $0xf8] sm:$0xff]
  %65 = vmatprep.subr.mxu0 %v34
  %66 = vmatpush1.msra.mxu0 %v33
  %67 = vmatprep.subr.mxu0 %v36
  %68 = vmatpush1.msra.mxu0 %v35
  %69 = vmatprep.subr.mxu0 %v38
  %70 = vmatpush1.msra.mxu0 %v37
  %71 = vmatprep.subr.mxu0 %v40
  %72 = vmatpush1.msra.mxu0 %v39
  %73 = vmatprep.subr.mxu0 %v42
  %74 = vmatpush1.msra.mxu0 %v41
  %75 = vmatprep.subr.mxu0 %v44
  %76 = vmatpush1.msra.mxu0 %v43
  %77 = vmatprep.subr.mxu0 %v46
  %78 = vmatpush1.msra.mxu0 %v45
  %79 = vmatprep.subr.mxu0 %v48
  %80 = vmatpush1.msra.mxu0 %v47
  %81 = vmatprep.subr.mxu0 %v50
  %82 = vmatpush1.msra.mxu0 %v49
  %83 = vmatprep.subr.mxu0 %v52
  %84 = vmatpush1.msra.mxu0 %v51
  %85 = vmatprep.subr.mxu0 %v54
  %86 = vmatpush1.msra.mxu0 %v53
  %87 = vmatprep.subr.mxu0 %v56
  %88 = vmatpush1.msra.mxu0 %v55
  %89 = vmatprep.subr.mxu0 %v58
  %90 = vmatpush1.msra.mxu0 %v57
  %91 = vmatprep.subr.mxu0 %v60
  %92 = vmatpush1.msra.mxu0 %v59
  %93 = vmatprep.subr.mxu0 %v62
  %94 = vmatpush1.msra.mxu0 %v61
  %95 = vmatprep.subr.mxu0 %v64
  %96 = vmatpush1.msra.mxu0 %v63
  %97 = vmatprep.subr.mxu0 0.0
  %98 = vmatpush1.msra.mxu0 0.0
  %99 = vmatprep.subr.mxu0 0.0
  %100 = vmatpush1.msra.mxu0 0.0
  %101 = vmatprep.subr.mxu0 0.0
  %102 = vmatpush1.msra.mxu0 0.0
  %103 = vmatprep.subr.mxu0 0.0
  %104 = vmatpush1.msra.mxu0 0.0
  %105 = vmatprep.subr.mxu0 0.0
  %106 = vmatpush1.msra.mxu0 0.0
  %107 = vmatprep.subr.mxu0 0.0
  %108 = vmatpush1.msra.mxu0 0.0
  %109 = vmatprep.subr.mxu0 0.0
  %110 = vmatpush1.msra.mxu0 0.0
  %111 = vmatprep.subr.mxu0 0.0
  %112 = vmatpush1.msra.mxu0 0.0
  %113 = vmatprep.subr.mxu0 0.0
  %114 = vmatpush1.msra.mxu0 0.0
  %115 = vmatprep.subr.mxu0 0.0
  %116 = vmatpush1.msra.mxu0 0.0
  %117 = vmatprep.subr.mxu0 0.0
  %118 = vmatpush1.msra.mxu0 0.0
  %119 = vmatprep.subr.mxu0 0.0
  %120 = vmatpush1.msra.mxu0 0.0
  %121 = vmatprep.subr.mxu0 0.0
  %122 = vmatpush1.msra.mxu0 0.0
  %123 = vmatprep.subr.mxu0 0.0
  %124 = vmatpush1.msra.mxu0 0.0
  %125 = vmatprep.subr.mxu0 0.0
  %126 = vmatpush1.msra.mxu0 0.0
  %127 = vmatprep.subr.mxu0 0.0
  %128 = vmatpush1.msra.mxu0 0.0
  %129 = vmatprep.mubr.f32.mxu0 0.0
  %130 = vmatmul.mubr.f32.gmra.mrb[0].mxu0 %v32
  %v131 = vpop.f32.mrb[0].mxu0
  %v132 = vadd.f32 0.0, %v131
  %v133 = vpop.f32.mrb[0].mxu0
  %v134 = vadd.f32 0.0, %v133
  %135 = vdwg.mxu0
  %v136 = vld [vmem:[%s2] sm:$0xff]
  %v137 = vld [vmem:[%s2 + $0x8] sm:$0xff]
  %v138 = vld [vmem:[%s2 + $0x10] sm:$0xff]
  %v139 = vld [vmem:[%s2 + $0x18] sm:$0xff]
  %v140 = vld [vmem:[%s2 + $0x20] sm:$0xff]
  %v141 = vld [vmem:[%s2 + $0x28] sm:$0xff]
  %v142 = vld [vmem:[%s2 + $0x30] sm:$0xff]
  %v143 = vld [vmem:[%s2 + $0x38] sm:$0xff]
  %v144 = vld [vmem:[%s3] sm:$0xff]
  %146 = vset.pattern.permute.xlu0 0
  %147 = vperm.xlu0 %146, %v144
  %v148 = vpop.permute.xlu0 %147
  %v149 = vrot.slane %v148, 1
  %v150 = vrot.slane %v148, 2
  %v151 = vrot.slane %v148, 3
  %v152 = vrot.slane %v148, 4
  %v153 = vrot.slane %v148, 5
  %v154 = vrot.slane %v148, 6
  %v155 = vrot.slane %v148, 7
  %v164 = vmul.f32 %v136, %v148
  %v165 = vmul.f32 %v137, %v149
  %v166 = vmul.f32 %v138, %v150
  %v167 = vmul.f32 %v139, %v151
  %v168 = vmul.f32 %v140, %v152
  %v169 = vmul.f32 %v141, %v153
  %v170 = vmul.f32 %v142, %v154
  %v171 = vmul.f32 %v143, %v155
  %v172 = vadd.f32 %v164, 0.0
  %v173 = vadd.f32 %v165, 0.0
  %v174 = vadd.f32 %v166, 0.0
  %v175 = vadd.f32 %v167, 0.0
  %v176 = vadd.f32 %v168, 0.0
  %v177 = vadd.f32 %v169, 0.0
  %v178 = vadd.f32 %v170, 0.0
  %v179 = vadd.f32 %v171, 0.0
  %180 = vset.pattern.permute.xlu0 1
  %181 = vperm.xlu0 %180, %v144
  %v182 = vpop.permute.xlu0 %181
  %v183 = vrot.slane %v182, 7
  %v184 = vrot.slane %v182, 1
  %v185 = vrot.slane %v182, 2
  %v186 = vrot.slane %v182, 3
  %v187 = vrot.slane %v182, 4
  %v188 = vrot.slane %v182, 5
  %v189 = vrot.slane %v182, 6
  %v198 = vmul.f32 %v136, %v183
  %v199 = vmul.f32 %v137, %v182
  %v200 = vmul.f32 %v138, %v184
  %v201 = vmul.f32 %v139, %v185
  %v202 = vmul.f32 %v140, %v186
  %v203 = vmul.f32 %v141, %v187
  %v204 = vmul.f32 %v142, %v188
  %v205 = vmul.f32 %v143, %v189
  %v214 = vrot.slane %v198, 1
  %v215 = vrot.slane %v199, 1
  %v216 = vrot.slane %v200, 1
  %v217 = vrot.slane %v201, 1
  %v218 = vrot.slane %v202, 1
  %v219 = vrot.slane %v203, 1
  %v220 = vrot.slane %v204, 1
  %v221 = vrot.slane %v205, 1
  %v230 = vadd.f32 %v172, %v214
  %v231 = vadd.f32 %v173, %v215
  %v232 = vadd.f32 %v174, %v216
  %v233 = vadd.f32 %v175, %v217
  %v234 = vadd.f32 %v176, %v218
  %v235 = vadd.f32 %v177, %v219
  %v236 = vadd.f32 %v178, %v220
  %v237 = vadd.f32 %v179, %v221
  %238 = vset.pattern.permute.xlu0 2
  %239 = vperm.xlu0 %238, %v144
  %v240 = vpop.permute.xlu0 %239
  %v241 = vrot.slane %v240, 6
  %v242 = vrot.slane %v240, 7
  %v243 = vrot.slane %v240, 1
  %v244 = vrot.slane %v240, 2
  %v245 = vrot.slane %v240, 3
  %v246 = vrot.slane %v240, 4
  %v247 = vrot.slane %v240, 5
  %v256 = vmul.f32 %v136, %v241
  %v257 = vmul.f32 %v137, %v242
  %v258 = vmul.f32 %v138, %v240
  %v259 = vmul.f32 %v139, %v243
  %v260 = vmul.f32 %v140, %v244
  %v261 = vmul.f32 %v141, %v245
  %v262 = vmul.f32 %v142, %v246
  %v263 = vmul.f32 %v143, %v247
  %v272 = vrot.slane %v256, 2
  %v273 = vrot.slane %v257, 2
  %v274 = vrot.slane %v258, 2
  %v275 = vrot.slane %v259, 2
  %v276 = vrot.slane %v260, 2
  %v277 = vrot.slane %v261, 2
  %v278 = vrot.slane %v262, 2
  %v279 = vrot.slane %v263, 2
  %v288 = vadd.f32 %v230, %v272
  %v289 = vadd.f32 %v231, %v273
  %v290 = vadd.f32 %v232, %v274
  %v291 = vadd.f32 %v233, %v275
  %v292 = vadd.f32 %v234, %v276
  %v293 = vadd.f32 %v235, %v277
  %v294 = vadd.f32 %v236, %v278
  %v295 = vadd.f32 %v237, %v279
  %296 = vset.pattern.permute.xlu0 3
  %297 = vperm.xlu0 %296, %v144
  %v298 = vpop.permute.xlu0 %297
  %v299 = vrot.slane %v298, 5
  %v300 = vrot.slane %v298, 6
  %v301 = vrot.slane %v298, 7
  %v302 = vrot.slane %v298, 1
  %v303 = vrot.slane %v298, 2
  %v304 = vrot.slane %v298, 3
  %v305 = vrot.slane %v298, 4
  %v314 = vmul.f32 %v136, %v299
  %v315 = vmul.f32 %v137, %v300
  %v316 = vmul.f32 %v138, %v301
  %v317 = vmul.f32 %v139, %v298
  %v318 = vmul.f32 %v140, %v302
  %v319 = vmul.f32 %v141, %v303
  %v320 = vmul.f32 %v142, %v304
  %v321 = vmul.f32 %v143, %v305
  %v330 = vrot.slane %v314, 3
  %v331 = vrot.slane %v315, 3
  %v332 = vrot.slane %v316, 3
  %v333 = vrot.slane %v317, 3
  %v334 = vrot.slane %v318, 3
  %v335 = vrot.slane %v319, 3
  %v336 = vrot.slane %v320, 3
  %v337 = vrot.slane %v321, 3
  %v346 = vadd.f32 %v288, %v330
  %v347 = vadd.f32 %v289, %v331
  %v348 = vadd.f32 %v290, %v332
  %v349 = vadd.f32 %v291, %v333
  %v350 = vadd.f32 %v292, %v334
  %v351 = vadd.f32 %v293, %v335
  %v352 = vadd.f32 %v294, %v336
  %v353 = vadd.f32 %v295, %v337
  %354 = vset.pattern.permute.xlu0 4
  %355 = vperm.xlu0 %354, %v144
  %v356 = vpop.permute.xlu0 %355
  %v357 = vrot.slane %v356, 4
  %v358 = vrot.slane %v356, 5
  %v359 = vrot.slane %v356, 6
  %v360 = vrot.slane %v356, 7
  %v361 = vrot.slane %v356, 1
  %v362 = vrot.slane %v356, 2
  %v363 = vrot.slane %v356, 3
  %v372 = vmul.f32 %v136, %v357
  %v373 = vmul.f32 %v137, %v358
  %v374 = vmul.f32 %v138, %v359
  %v375 = vmul.f32 %v139, %v360
  %v376 = vmul.f32 %v140, %v356
  %v377 = vmul.f32 %v141, %v361
  %v378 = vmul.f32 %v142, %v362
  %v379 = vmul.f32 %v143, %v363
  %v388 = vrot.slane %v372, 4
  %v389 = vrot.slane %v373, 4
  %v390 = vrot.slane %v374, 4
  %v391 = vrot.slane %v375, 4
  %v392 = vrot.slane %v376, 4
  %v393 = vrot.slane %v377, 4
  %v394 = vrot.slane %v378, 4
  %v395 = vrot.slane %v379, 4
  %v404 = vadd.f32 %v346, %v388
  %v405 = vadd.f32 %v347, %v389
  %v406 = vadd.f32 %v348, %v390
  %v407 = vadd.f32 %v349, %v391
  %v408 = vadd.f32 %v350, %v392
  %v409 = vadd.f32 %v351, %v393
  %v410 = vadd.f32 %v352, %v394
  %v411 = vadd.f32 %v353, %v395
  %412 = vset.pattern.permute.xlu0 5
  %413 = vperm.xlu0 %412, %v144
  %v414 = vpop.permute.xlu0 %413
  %v415 = vrot.slane %v414, 3
  %v416 = vrot.slane %v414, 4
  %v417 = vrot.slane %v414, 5
  %v418 = vrot.slane %v414, 6
  %v419 = vrot.slane %v414, 7
  %v420 = vrot.slane %v414, 1
  %v421 = vrot.slane %v414, 2
  %v430 = vmul.f32 %v136, %v415
  %v431 = vmul.f32 %v137, %v416
  %v432 = vmul.f32 %v138, %v417
  %v433 = vmul.f32 %v139, %v418
  %v434 = vmul.f32 %v140, %v419
  %v435 = vmul.f32 %v141, %v414
  %v436 = vmul.f32 %v142, %v420
  %v437 = vmul.f32 %v143, %v421
  %v446 = vrot.slane %v430, 5
  %v447 = vrot.slane %v431, 5
  %v448 = vrot.slane %v432, 5
  %v449 = vrot.slane %v433, 5
  %v450 = vrot.slane %v434, 5
  %v451 = vrot.slane %v435, 5
  %v452 = vrot.slane %v436, 5
  %v453 = vrot.slane %v437, 5
  %v462 = vadd.f32 %v404, %v446
  %v463 = vadd.f32 %v405, %v447
  %v464 = vadd.f32 %v406, %v448
  %v465 = vadd.f32 %v407, %v449
  %v466 = vadd.f32 %v408, %v450
  %v467 = vadd.f32 %v409, %v451
  %v468 = vadd.f32 %v410, %v452
  %v469 = vadd.f32 %v411, %v453
  %470 = vset.pattern.permute.xlu0 6
  %471 = vperm.xlu0 %470, %v144
  %v472 = vpop.permute.xlu0 %471
  %v473 = vrot.slane %v472, 2
  %v474 = vrot.slane %v472, 3
  %v475 = vrot.slane %v472, 4
  %v476 = vrot.slane %v472, 5
  %v477 = vrot.slane %v472, 6
  %v478 = vrot.slane %v472, 7
  %v479 = vrot.slane %v472, 1
  %v488 = vmul.f32 %v136, %v473
  %v489 = vmul.f32 %v137, %v474
  %v490 = vmul.f32 %v138, %v475
  %v491 = vmul.f32 %v139, %v476
  %v492 = vmul.f32 %v140, %v477
  %v493 = vmul.f32 %v141, %v478
  %v494 = vmul.f32 %v142, %v472
  %v495 = vmul.f32 %v143, %v479
  %v504 = vrot.slane %v488, 6
  %v505 = vrot.slane %v489, 6
  %v506 = vrot.slane %v490, 6
  %v507 = vrot.slane %v491, 6
  %v508 = vrot.slane %v492, 6
  %v509 = vrot.slane %v493, 6
  %v510 = vrot.slane %v494, 6
  %v511 = vrot.slane %v495, 6
  %v520 = vadd.f32 %v462, %v504
  %v521 = vadd.f32 %v463, %v505
  %v522 = vadd.f32 %v464, %v506
  %v523 = vadd.f32 %v465, %v507
  %v524 = vadd.f32 %v466, %v508
  %v525 = vadd.f32 %v467, %v509
  %v526 = vadd.f32 %v468, %v510
  %v527 = vadd.f32 %v469, %v511
  %528 = vset.pattern.permute.xlu0 7
  %529 = vperm.xlu0 %528, %v144
  %v530 = vpop.permute.xlu0 %529
  %v531 = vrot.slane %v530, 1
  %v532 = vrot.slane %v530, 2
  %v533 = vrot.slane %v530, 3
  %v534 = vrot.slane %v530, 4
  %v535 = vrot.slane %v530, 5
  %v536 = vrot.slane %v530, 6
  %v537 = vrot.slane %v530, 7
  %v546 = vmul.f32 %v136, %v531
  %v547 = vmul.f32 %v137, %v532
  %v548 = vmul.f32 %v138, %v533
  %v549 = vmul.f32 %v139, %v534
  %v550 = vmul.f32 %v140, %v535
  %v551 = vmul.f32 %v141, %v536
  %v552 = vmul.f32 %v142, %v537
  %v553 = vmul.f32 %v143, %v530
  %v562 = vrot.slane %v546, 7
  %v563 = vrot.slane %v547, 7
  %v564 = vrot.slane %v548, 7
  %v565 = vrot.slane %v549, 7
  %v566 = vrot.slane %v550, 7
  %v567 = vrot.slane %v551, 7
  %v568 = vrot.slane %v552, 7
  %v569 = vrot.slane %v553, 7
  %v578 = vadd.f32 %v520, %v562
  %v579 = vadd.f32 %v521, %v563
  %v580 = vadd.f32 %v522, %v564
  %v581 = vadd.f32 %v523, %v565
  %v582 = vadd.f32 %v524, %v566
  %v583 = vadd.f32 %v525, %v567
  %v584 = vadd.f32 %v526, %v568
  %v585 = vadd.f32 %v527, %v569
  %vm586 = vcmask 64512
  %v587 = vsel %vm586, %v144, 0.0
  %588 = vadd.xlane.f32.xlu0 %v587
  %v589 = vpop.xlane.xlu0 %588
  %v590 = vmax.f32 %v589, 1.0
  %v592 = vrot.slane %v590, 1
  %v593 = vrot.slane %v590, 2
  %v594 = vrot.slane %v590, 3
  %v595 = vrot.slane %v590, 4
  %v596 = vrot.slane %v590, 5
  %v597 = vrot.slane %v590, 6
  %v598 = vrot.slane %v590, 7
  %v607 = vrcp.pop %v590
  %v608 = vmul.f32 %v578, %v607
  %v609 = vrcp.pop %v592
  %v610 = vmul.f32 %v579, %v609
  %v611 = vrcp.pop %v593
  %v612 = vmul.f32 %v580, %v611
  %v613 = vrcp.pop %v594
  %v614 = vmul.f32 %v581, %v613
  %v615 = vrcp.pop %v595
  %v616 = vmul.f32 %v582, %v615
  %v617 = vrcp.pop %v596
  %v618 = vmul.f32 %v583, %v617
  %v619 = vrcp.pop %v597
  %v620 = vmul.f32 %v584, %v619
  %v621 = vrcp.pop %v598
  %v622 = vmul.f32 %v585, %v621
  %v623 = vtanh.pop %v608
  %v624 = vtanh.pop %v610
  %v625 = vtanh.pop %v612
  %v626 = vtanh.pop %v614
  %v627 = vtanh.pop %v616
  %v628 = vtanh.pop %v618
  %v629 = vtanh.pop %v620
  %v630 = vtanh.pop %v622
  %v631 = vld [vmem:[%s6] sm:$0xff]
  %v632 = vpack.c.bf16 %v132, %v132
  %v633 = vpack.c.bf16 %v134, %v134
  %v634 = vld [vmem:[%s4] sm:$0xf]
  %v635 = vld [vmem:[%s4 + $0x4] sm:$0xf]
  %v636 = vld [vmem:[%s4 + $0x8] sm:$0xf]
  %v637 = vld [vmem:[%s4 + $0xc] sm:$0xf]
  %v638 = vld [vmem:[%s4 + $0x10] sm:$0xf]
  %v639 = vld [vmem:[%s4 + $0x14] sm:$0xf]
  %v640 = vld [vmem:[%s4 + $0x18] sm:$0xf]
  %v641 = vld [vmem:[%s4 + $0x1c] sm:$0xf]
  %v642 = vld [vmem:[%s4 + $0x20] sm:$0xf]
  %v643 = vld [vmem:[%s4 + $0x24] sm:$0xf]
  %v644 = vld [vmem:[%s4 + $0x28] sm:$0xf]
  %v645 = vld [vmem:[%s4 + $0x2c] sm:$0xf]
  %v646 = vld [vmem:[%s4 + $0x30] sm:$0xf]
  %v647 = vld [vmem:[%s4 + $0x34] sm:$0xf]
  %v648 = vld [vmem:[%s4 + $0x38] sm:$0xf]
  %v649 = vld [vmem:[%s4 + $0x3c] sm:$0xf]
  %v650 = vld [vmem:[%s4 + $0x40] sm:$0xf]
  %v651 = vld [vmem:[%s4 + $0x44] sm:$0xf]
  %v652 = vld [vmem:[%s4 + $0x48] sm:$0xf]
  %v653 = vld [vmem:[%s4 + $0x4c] sm:$0xf]
  %v654 = vld [vmem:[%s4 + $0x50] sm:$0xf]
  %v655 = vld [vmem:[%s4 + $0x54] sm:$0xf]
  %v656 = vld [vmem:[%s4 + $0x58] sm:$0xf]
  %v657 = vld [vmem:[%s4 + $0x5c] sm:$0xf]
  %v658 = vld [vmem:[%s4 + $0x60] sm:$0xf]
  %v659 = vld [vmem:[%s4 + $0x64] sm:$0xf]
  %v660 = vld [vmem:[%s4 + $0x68] sm:$0xf]
  %v661 = vld [vmem:[%s4 + $0x6c] sm:$0xf]
  %v662 = vld [vmem:[%s4 + $0x70] sm:$0xf]
  %v663 = vld [vmem:[%s4 + $0x74] sm:$0xf]
  %v664 = vld [vmem:[%s4 + $0x78] sm:$0xf]
  %v665 = vld [vmem:[%s4 + $0x7c] sm:$0xf]
  %v666 = vlaneseq
  %v667 = vshrl.u32 %v666, 7
  %v668 = vsub.s32 0, %v667
  %v669 = vrot.slane %v631, %v668
  %v702 = vunpack.c.l.b16 %v634
  %v703 = vunpack.c.l.b16 %v635
  %v704 = vunpack.c.l.b16 %v636
  %v705 = vunpack.c.l.b16 %v637
  %v706 = vunpack.c.l.b16 %v638
  %v707 = vunpack.c.l.b16 %v639
  %v708 = vunpack.c.l.b16 %v640
  %v709 = vunpack.c.l.b16 %v641
  %v710 = vunpack.c.l.b16 %v642
  %v711 = vunpack.c.l.b16 %v643
  %v712 = vunpack.c.l.b16 %v644
  %v713 = vunpack.c.l.b16 %v645
  %v714 = vunpack.c.l.b16 %v646
  %v715 = vunpack.c.l.b16 %v647
  %v716 = vunpack.c.l.b16 %v648
  %v717 = vunpack.c.l.b16 %v649
  %v718 = vunpack.c.l.b16 %v650
  %v719 = vunpack.c.l.b16 %v651
  %v720 = vunpack.c.l.b16 %v652
  %v721 = vunpack.c.l.b16 %v653
  %v722 = vunpack.c.l.b16 %v654
  %v723 = vunpack.c.l.b16 %v655
  %v724 = vunpack.c.l.b16 %v656
  %v725 = vunpack.c.l.b16 %v657
  %v726 = vunpack.c.l.b16 %v658
  %v727 = vunpack.c.l.b16 %v659
  %v728 = vunpack.c.l.b16 %v660
  %v729 = vunpack.c.l.b16 %v661
  %v730 = vunpack.c.l.b16 %v662
  %v731 = vunpack.c.l.b16 %v663
  %v732 = vunpack.c.l.b16 %v664
  %v733 = vunpack.c.l.b16 %v665
  %v734 = vpack.c.b16 %v703, %v702
  %v735 = vpack.c.b16 %v705, %v704
  %v736 = vpack.c.b16 %v707, %v706
  %v737 = vpack.c.b16 %v709, %v708
  %v738 = vpack.c.b16 %v711, %v710
  %v739 = vpack.c.b16 %v713, %v712
  %v740 = vpack.c.b16 %v715, %v714
  %v741 = vpack.c.b16 %v717, %v716
  %v742 = vpack.c.b16 %v719, %v718
  %v743 = vpack.c.b16 %v721, %v720
  %v744 = vpack.c.b16 %v723, %v722
  %v745 = vpack.c.b16 %v725, %v724
  %v746 = vpack.c.b16 %v727, %v726
  %v747 = vpack.c.b16 %v729, %v728
  %v748 = vpack.c.b16 %v731, %v730
  %v749 = vpack.c.b16 %v733, %v732
  %766 = vmatprep.subr.bf16.mxu0 0
  %767 = vmatpush1.bf16.msra.mxu0 %v734
  %768 = vmatprep.subr.bf16.mxu0 0
  %769 = vmatpush1.bf16.msra.mxu0 %v735
  %770 = vmatprep.subr.bf16.mxu0 0
  %771 = vmatpush1.bf16.msra.mxu0 %v736
  %772 = vmatprep.subr.bf16.mxu0 0
  %773 = vmatpush1.bf16.msra.mxu0 %v737
  %774 = vmatprep.subr.bf16.mxu0 0
  %775 = vmatpush1.bf16.msra.mxu0 %v738
  %776 = vmatprep.subr.bf16.mxu0 0
  %777 = vmatpush1.bf16.msra.mxu0 %v739
  %778 = vmatprep.subr.bf16.mxu0 0
  %779 = vmatpush1.bf16.msra.mxu0 %v740
  %780 = vmatprep.subr.bf16.mxu0 0
  %781 = vmatpush1.bf16.msra.mxu0 %v741
  %782 = vmatprep.subr.bf16.mxu0 0
  %783 = vmatpush1.bf16.msra.mxu0 %v742
  %784 = vmatprep.subr.bf16.mxu0 0
  %785 = vmatpush1.bf16.msra.mxu0 %v743
  %786 = vmatprep.subr.bf16.mxu0 0
  %787 = vmatpush1.bf16.msra.mxu0 %v744
  %788 = vmatprep.subr.bf16.mxu0 0
  %789 = vmatpush1.bf16.msra.mxu0 %v745
  %790 = vmatprep.subr.bf16.mxu0 0
  %791 = vmatpush1.bf16.msra.mxu0 %v746
  %792 = vmatprep.subr.bf16.mxu0 0
  %793 = vmatpush1.bf16.msra.mxu0 %v747
  %794 = vmatprep.subr.bf16.mxu0 0
  %795 = vmatpush1.bf16.msra.mxu0 %v748
  %796 = vmatprep.subr.bf16.mxu0 0
  %797 = vmatpush1.bf16.msra.mxu0 %v749
  %798 = vmatprep.mubr.bf16.mxu0 %v633
  %799 = vmatmul.mubr.bf16.gmra.mrb[0].mxu0 %v632
  %v800 = vpop.f32.mrb[0].mxu0
  %v801 = vadd.f32 %v669, %v800
  %v802 = vpop.f32.mrb[0].mxu0
  %v803 = vpop.f32.mrb[0].mxu0
  %v804 = vpop.f32.mrb[0].mxu0
  %805 = vdwg.mxu0
  %806 = vadd.xlane.f32.xlu0 %v801
  %v807 = vpop.xlane.xlu0 %806
  %v808 = vrcp.pop 128.0
  %v809 = vmul.f32 %v807, %v808
  %v810 = vsub.f32 %v801, %v809
  %v811 = vmul.f32 %v810, %v810
  %812 = vadd.xlane.f32.xlu0 %v811
  %v813 = vpop.xlane.xlu0 %812
  %v814 = vmul.f32 %v813, %v808
  %v815 = vadd.f32 %v814, 1e-05
  %v816 = vrsqrt.pop %v815
  %v817 = vmul.f32 %v810, %v816
  %v818 = vlaneseq
  %v819 = vshrl.u32 %v818, 7
  %v820 = vsub.s32 1, %v819
  %v821 = vrot.slane %v631, %v820
  %v822 = vmul.f32 %v817, %v821
  %v823 = vlaneseq
  %v824 = vshrl.u32 %v823, 7
  %v825 = vsub.s32 2, %v824
  %v826 = vrot.slane %v631, %v825
  %v827 = vadd.f32 %v822, %v826
  %828 = vst [vmem:[%s8] sm:$0xff] %v827
  %v829 = vld [vmem:[%s7] sm:$0xff]
  %v830 = vpack.c.bf16 %v623, %v623
  %v831 = vpack.c.bf16 %v624, %v624
  %v832 = vpack.c.bf16 %v625, %v625
  %v833 = vpack.c.bf16 %v626, %v626
  %v834 = vpack.c.bf16 %v627, %v627
  %v835 = vpack.c.bf16 %v628, %v628
  %v836 = vpack.c.bf16 %v629, %v629
  %v837 = vpack.c.bf16 %v630, %v630
  %v838 = vld [vmem:[%s5] sm:$0xf]
  %v839 = vld [vmem:[%s5 + $0x4] sm:$0xf]
  %v840 = vld [vmem:[%s5 + $0x8] sm:$0xf]
  %v841 = vld [vmem:[%s5 + $0xc] sm:$0xf]
  %v842 = vld [vmem:[%s5 + $0x10] sm:$0xf]
  %v843 = vld [vmem:[%s5 + $0x14] sm:$0xf]
  %v844 = vld [vmem:[%s5 + $0x18] sm:$0xf]
  %v845 = vld [vmem:[%s5 + $0x1c] sm:$0xf]
  %v846 = vld [vmem:[%s5 + $0x20] sm:$0xf]
  %v847 = vld [vmem:[%s5 + $0x24] sm:$0xf]
  %v848 = vld [vmem:[%s5 + $0x28] sm:$0xf]
  %v849 = vld [vmem:[%s5 + $0x2c] sm:$0xf]
  %v850 = vld [vmem:[%s5 + $0x30] sm:$0xf]
  %v851 = vld [vmem:[%s5 + $0x34] sm:$0xf]
  %v852 = vld [vmem:[%s5 + $0x38] sm:$0xf]
  %v853 = vld [vmem:[%s5 + $0x3c] sm:$0xf]
  %v854 = vlaneseq
  %v855 = vshrl.u32 %v854, 7
  %v856 = vsub.s32 0, %v855
  %v857 = vrot.slane %v829, %v856
  %v866 = vunpack.c.l.b16 %v830
  %v867 = vunpack.c.l.b16 %v831
  %v868 = vunpack.c.l.b16 %v832
  %v869 = vunpack.c.l.b16 %v833
  %v870 = vunpack.c.l.b16 %v834
  %v871 = vunpack.c.l.b16 %v835
  %v872 = vunpack.c.l.b16 %v836
  %v873 = vunpack.c.l.b16 %v837
  %v874 = vrot.slane %v867, 7
  %vm875 = vcmask 1041409
  %v876 = vsel %vm875, %v874, %v866
  %v877 = vrot.slane %v868, 6
  %vm878 = vcmask 1042434
  %v879 = vsel %vm878, %v877, %v876
  %v880 = vrot.slane %v869, 5
  %vm881 = vcmask 1043459
  %v882 = vsel %vm881, %v880, %v879
  %v883 = vrot.slane %v870, 4
  %vm884 = vcmask 1044484
  %v885 = vsel %vm884, %v883, %v882
  %v886 = vrot.slane %v871, 3
  %vm887 = vcmask 1045509
  %v888 = vsel %vm887, %v886, %v885
  %v889 = vrot.slane %v872, 2
  %vm890 = vcmask 1046534
  %v891 = vsel %vm890, %v889, %v888
  %v892 = vrot.slane %v873, 1
  %vm893 = vcmask 1047559
  %v894 = vsel %vm893, %v892, %v891
  %v895 = vpack.c.b16 %v894, %v894
  %v913 = vunpack.c.l.b16 %v838
  %v914 = vunpack.c.l.b16 %v839
  %v915 = vunpack.c.l.b16 %v840
  %v916 = vunpack.c.l.b16 %v841
  %v917 = vunpack.c.l.b16 %v842
  %v918 = vunpack.c.l.b16 %v843
  %v919 = vunpack.c.l.b16 %v844
  %v920 = vunpack.c.l.b16 %v845
  %v921 = vunpack.c.l.b16 %v846
  %v922 = vunpack.c.l.b16 %v847
  %v923 = vunpack.c.l.b16 %v848
  %v924 = vunpack.c.l.b16 %v849
  %v925 = vunpack.c.l.b16 %v850
  %v926 = vunpack.c.l.b16 %v851
  %v927 = vunpack.c.l.b16 %v852
  %v928 = vunpack.c.l.b16 %v853
  %v929 = vpack.c.b16 %v914, %v913
  %v930 = vpack.c.b16 %v916, %v915
  %v931 = vpack.c.b16 %v918, %v917
  %v932 = vpack.c.b16 %v920, %v919
  %v933 = vpack.c.b16 %v922, %v921
  %v934 = vpack.c.b16 %v924, %v923
  %v935 = vpack.c.b16 %v926, %v925
  %v936 = vpack.c.b16 %v928, %v927
  %945 = vmatprep.subr.bf16.mxu0 0
  %946 = vmatpush1.bf16.msra.mxu0 %v929
  %947 = vmatprep.subr.bf16.mxu0 0
  %948 = vmatpush1.bf16.msra.mxu0 %v930
  %949 = vmatprep.subr.bf16.mxu0 0
  %950 = vmatpush1.bf16.msra.mxu0 %v931
  %951 = vmatprep.subr.bf16.mxu0 0
  %952 = vmatpush1.bf16.msra.mxu0 %v932
  %953 = vmatprep.subr.bf16.mxu0 0
  %954 = vmatpush1.bf16.msra.mxu0 %v933
  %955 = vmatprep.subr.bf16.mxu0 0
  %956 = vmatpush1.bf16.msra.mxu0 %v934
  %957 = vmatprep.subr.bf16.mxu0 0
  %958 = vmatpush1.bf16.msra.mxu0 %v935
  %959 = vmatprep.subr.bf16.mxu0 0
  %960 = vmatpush1.bf16.msra.mxu0 %v936
  %961 = vmatprep.subr.bf16.mxu0 0
  %962 = vmatpush1.bf16.msra.mxu0 0
  %963 = vmatprep.subr.bf16.mxu0 0
  %964 = vmatpush1.bf16.msra.mxu0 0
  %965 = vmatprep.subr.bf16.mxu0 0
  %966 = vmatpush1.bf16.msra.mxu0 0
  %967 = vmatprep.subr.bf16.mxu0 0
  %968 = vmatpush1.bf16.msra.mxu0 0
  %969 = vmatprep.subr.bf16.mxu0 0
  %970 = vmatpush1.bf16.msra.mxu0 0
  %971 = vmatprep.subr.bf16.mxu0 0
  %972 = vmatpush1.bf16.msra.mxu0 0
  %973 = vmatprep.subr.bf16.mxu0 0
  %974 = vmatpush1.bf16.msra.mxu0 0
  %975 = vmatprep.subr.bf16.mxu0 0
  %976 = vmatpush1.bf16.msra.mxu0 0
  %977 = vmatprep.mubr.bf16.mxu0 0
  %978 = vmatmul.mubr.bf16.gmra.mrb[0].mxu0 %v895
  %v979 = vpop.f32.mrb[0].mxu0
  %v980 = vadd.f32 %v857, %v979
  %v981 = vpop.f32.mrb[0].mxu0
  %v982 = vpop.f32.mrb[0].mxu0
  %v983 = vpop.f32.mrb[0].mxu0
  %984 = vdwg.mxu0
  %985 = vadd.xlane.f32.xlu0 %v980
  %v986 = vpop.xlane.xlu0 %985
  %v987 = vmul.f32 %v986, %v808
  %v988 = vsub.f32 %v980, %v987
  %v989 = vmul.f32 %v988, %v988
  %990 = vadd.xlane.f32.xlu0 %v989
  %v991 = vpop.xlane.xlu0 %990
  %v992 = vmul.f32 %v991, %v808
  %v993 = vadd.f32 %v992, 1e-05
  %v994 = vrsqrt.pop %v993
  %v995 = vmul.f32 %v988, %v994
  %v996 = vlaneseq
  %v997 = vshrl.u32 %v996, 7
  %v998 = vsub.s32 1, %v997
  %v999 = vrot.slane %v829, %v998
  %v1000 = vmul.f32 %v995, %v999
  %v1001 = vlaneseq
  %v1002 = vshrl.u32 %v1001, 7
  %v1003 = vsub.s32 2, %v1002
  %v1004 = vrot.slane %v829, %v1003
  %v1005 = vadd.f32 %v1000, %v1004
  %1006 = vst [vmem:[%s9] sm:$0xff] %v1005
  // Predicated region
  $region34: #{joint_embedding_forward.1} parent=0 // pred_check
    _
  $region35: #{joint_embedding_forward.1} parent=0 // pred_check_branch
    %1008 = sbr.rel (0) target = $region37
  $region36: #{joint_embedding_forward.1} parent=0 // pred_region
    _
  $region37: #{joint_embedding_forward.1} parent=0 // pred_fallthru
    _
  // Predicated region
  $region38: #{joint_embedding_forward.1} parent=0 // pred_check
    _
  $region39: #{joint_embedding_forward.1} parent=0 // pred_check_branch
    %1010 = sbr.rel (0) target = $region41
  $region40: #{joint_embedding_forward.1} parent=0 // pred_region
    _
  $region41: #{joint_embedding_forward.1} parent=0 // pred_fallthru
    _
  // Predicated region
  $region42: #{joint_embedding_forward.1} parent=0 // pred_check
    _
  $region43: #{joint_embedding_forward.1} parent=0 // pred_check_branch
    %1012 = sbr.rel (0) target = $region45
  $region44: #{joint_embedding_forward.1} parent=0 // pred_region
    _
  $region45: #{joint_embedding_forward.1} parent=0 // pred_fallthru
    _
  // Predicated region
  $region46: #{joint_embedding_forward.1} parent=0 // pred_check
    _
  $region47: #{joint_embedding_forward.1} parent=0 // pred_check_branch
    %1014 = sbr.rel (0) target = $region49
  $region48: #{joint_embedding_forward.1} parent=0 // pred_region
    _
  $region49: #{joint_embedding_forward.1} parent=0 // pred_fallthru
    _

</llo_original>
